<compile_context>
chip_gen: v6e
topology: v6e:2x2x1
jax: 0.10.0
libtpu: 0.0.40
codegen_flags: <defaults>
</compile_context>

<pallas_src>
import jax
import jax.numpy as jnp
from jax.experimental import pallas as pl
from jax.experimental.pallas import tpu as pltpu

# Fixed (non-learnable) parameters from the PyTorch script.
LEAK_I = 0.7   # leakage_syn
LEAK_V = 0.6   # leakage_mem
LEAK_T = 0.6   # leakage_thr
BASE_T = 1.0   # base_thr
ADD_T  = 0.1   # add_thr
W_SYN  = 0.5   # weight_syn


def _alif_scalar_kernel(x_ref, w_ref, s0_ref, out_ref, i_ref, v_ref, a_ref, s_ref):
    """1x1 neuron: entire recurrence on the scalar core (all refs in SMEM).

    x_ref  : (seq,)  input drive per timestep
    w_ref  : (1,)    synaptic weight
    s0_ref : (4,)    initial state [i, v, a, s]
    out_ref: (seq,)  spike per timestep
    i/v/a/s_ref : (seq,) per-timestep post-update state histories
    """
    seq = x_ref.shape[0]
    w = w_ref[0]
    i = s0_ref[0]
    v = s0_ref[1]
    a = s0_ref[2]
    s = s0_ref[3]
    for t in range(seq):  # seq is small & static -> fully unrolled scalar code
        i = LEAK_I * i + w * x_ref[t]
        v = LEAK_V * v * (1.0 - s) + i
        a = LEAK_T * a + ADD_T * s
        s = jnp.where(v - (BASE_T + a) > 0.0, 1.0, 0.0)
        out_ref[t] = s
        i_ref[t] = i
        v_ref[t] = v
        a_ref[t] = a
        s_ref[t] = s


def _alif_vector_kernel(x_ref, wt_ref, s0_ref, out_ref, i_ref, v_ref, a_ref, s_ref):
    """General path (n_in, n_out > 1): VPU/MXU, lane axis = n_out.

    x_ref  : (seq, n_in)
    wt_ref : (n_in, n_out)   weight pre-transposed in the wrapper (no in-kernel transpose)
    s0_ref : (4, n_out)
    out_ref, i/v/a/s_ref : (seq, n_out)
    """
    seq = x_ref.shape[0]

    # Feed-forward term is state-independent -> hoisted out of the recurrence.
    ff_all = jnp.dot(x_ref[...], wt_ref[...],
                     preferred_element_type=jnp.float32)      # (seq, n_out)

    s0 = s0_ref[...]                                          # single load
    i = s0[0:1, :]
    v = s0[1:2, :]
    a = s0[2:3, :]
    s = s0[3:4, :]

    out_rows, i_rows, v_rows, a_rows, s_rows = [], [], [], [], []
    for t in range(seq):                                      # unrolled, register-resident
        i = LEAK_I * i + ff_all[t:t + 1, :]
        v = LEAK_V * v * (1.0 - s) + i
        a = LEAK_T * a + ADD_T * s
        s = (v - (BASE_T + a) > 0.0).astype(jnp.float32)
        out_rows.append(s)
        i_rows.append(i)
        v_rows.append(v)
        a_rows.append(a)
        s_rows.append(s)

    # Sublane-only (axis-0) concatenation; exactly five dense slab writes, no lane concats.
    out_ref[...] = jnp.concatenate(out_rows, axis=0)
    i_ref[...] = jnp.concatenate(i_rows, axis=0)
    v_ref[...] = jnp.concatenate(v_rows, axis=0)
    a_ref[...] = jnp.concatenate(a_rows, axis=0)
    s_ref[...] = jnp.concatenate(s_rows, axis=0)


def snn_test_forward(x, state0, weight):
    """x: (seq, n_in) f32; state0: (4, n_out) f32; weight: (n_out, n_in) f32.
    Returns (outputs (seq, n_out), states (seq, 4, n_out)) matching the PyTorch
    SNN_test.forward (torch.stack over timesteps)."""
    seq, n_in = x.shape
    n_out = weight.shape[0]
    x = x.astype(jnp.float32)
    state0 = state0.astype(jnp.float32)
    weight = weight.astype(jnp.float32)

    if n_in == 1 and n_out == 1:
        # Degenerate shape of the actual module -> scalar-core path via SMEM.
        smem = pl.BlockSpec(memory_space=pltpu.MemorySpace.SMEM)
        flat = tuple(jax.ShapeDtypeStruct((seq,), jnp.float32) for _ in range(5))
        out_f, i_f, v_f, a_f, s_f = pl.pallas_call(
            _alif_scalar_kernel,
            out_shape=flat,
            in_specs=[smem, smem, smem],
            out_specs=tuple(smem for _ in range(5)),
        )(x.reshape(seq), weight.reshape(1), state0.reshape(4))
        outputs = out_f.reshape(seq, 1)
        i_h, v_h, a_h, s_h = (r.reshape(seq, 1) for r in (i_f, v_f, a_f, s_f))
    else:
        # General path: lane axis = n_out, weight transposed once outside the kernel.
        vmem = pl.BlockSpec(memory_space=pltpu.MemorySpace.VMEM)
        structs = tuple(jax.ShapeDtypeStruct((seq, n_out), jnp.float32) for _ in range(5))
        outputs, i_h, v_h, a_h, s_h = pl.pallas_call(
            _alif_vector_kernel,
            out_shape=structs,
            in_specs=[vmem, vmem, vmem],
            out_specs=tuple(vmem for _ in range(5)),
        )(x, weight.T, state0)

    states = jnp.stack([i_h, v_h, a_h, s_h], axis=1)          # (seq, 4, n_out), glue only
    return outputs, states


if __name__ == "__main__":
    seq_length, n_inputs, n_outputs = 8, 1, 1                 # module: input_f1 = output_f1 = 1

    key = jax.random.PRNGKey(0)
    # Positive drive so the neuron has a chance to cross the base threshold of 1.0.
    x = jax.random.uniform(key, (seq_length, n_inputs), jnp.float32,
                           minval=0.0, maxval=4.0)
    state0 = jnp.zeros((4, n_outputs), jnp.float32)           # states = torch.zeros(4, 1)
    weight = jnp.full((n_outputs, n_inputs), W_SYN, jnp.float32)  # f1.ff.weight = [0.5]

    outputs, states = snn_test_forward(x, state0, weight)
    jax.block_until_ready((outputs, states))

    assert outputs.shape == (seq_length, n_outputs)
    assert states.shape == (seq_length, 4, n_outputs)
    print("KERNEL_OK")
</pallas_src>

<mosaic_0001>
module attributes {stable_mosaic.version = 11 : i64} {
  func.func @_alif_scalar_kernel(%arg0: memref<8xf32, #tpu.memory_space<smem>>, %arg1: memref<1xf32, #tpu.memory_space<smem>>, %arg2: memref<4xf32, #tpu.memory_space<smem>>, %arg3: memref<8xf32, #tpu.memory_space<smem>>, %arg4: memref<8xf32, #tpu.memory_space<smem>>, %arg5: memref<8xf32, #tpu.memory_space<smem>>, %arg6: memref<8xf32, #tpu.memory_space<smem>>, %arg7: memref<8xf32, #tpu.memory_space<smem>>) attributes {dimension_semantics = [], scalar_prefetch = 0 : i64, scratch_operands = 0 : i64, tpu.core_type = #tpu.core_type<tc>} {
    %c0 = arith.constant 0 : index
    %0 = memref.load %arg1[%c0] : memref<1xf32, #tpu.memory_space<smem>>
    %c0_0 = arith.constant 0 : index
    %1 = memref.load %arg2[%c0_0] : memref<4xf32, #tpu.memory_space<smem>>
    %c1 = arith.constant 1 : index
    %2 = memref.load %arg2[%c1] : memref<4xf32, #tpu.memory_space<smem>>
    %c2 = arith.constant 2 : index
    %3 = memref.load %arg2[%c2] : memref<4xf32, #tpu.memory_space<smem>>
    %c3 = arith.constant 3 : index
    %4 = memref.load %arg2[%c3] : memref<4xf32, #tpu.memory_space<smem>>
    %cst = arith.constant 0.699999988 : f32
    %5 = arith.mulf %cst, %1 : f32
    %c0_1 = arith.constant 0 : index
    %6 = memref.load %arg0[%c0_1] : memref<8xf32, #tpu.memory_space<smem>>
    %7 = arith.mulf %0, %6 : f32
    %8 = arith.addf %5, %7 : f32
    %cst_2 = arith.constant 6.000000e-01 : f32
    %9 = arith.mulf %cst_2, %2 : f32
    %cst_3 = arith.constant 1.000000e+00 : f32
    %10 = arith.subf %cst_3, %4 : f32
    %11 = arith.mulf %9, %10 : f32
    %12 = arith.addf %11, %8 : f32
    %cst_4 = arith.constant 6.000000e-01 : f32
    %13 = arith.mulf %cst_4, %3 : f32
    %cst_5 = arith.constant 1.000000e-01 : f32
    %14 = arith.mulf %cst_5, %4 : f32
    %15 = arith.addf %13, %14 : f32
    %cst_6 = arith.constant 1.000000e+00 : f32
    %16 = arith.addf %cst_6, %15 : f32
    %17 = arith.subf %12, %16 : f32
    %cst_7 = arith.constant 0.000000e+00 : f32
    %18 = arith.cmpf ogt, %17, %cst_7 : f32
    %cst_8 = arith.constant 1.000000e+00 : f32
    %cst_9 = arith.constant 0.000000e+00 : f32
    %19 = arith.select %18, %cst_8, %cst_9 : f32
    %c0_10 = arith.constant 0 : index
    %20 = memref.load %arg3[%c0_10] : memref<8xf32, #tpu.memory_space<smem>>
    memref.store %19, %arg3[%c0_10] : memref<8xf32, #tpu.memory_space<smem>>
    %c0_11 = arith.constant 0 : index
    %21 = memref.load %arg4[%c0_11] : memref<8xf32, #tpu.memory_space<smem>>
    memref.store %8, %arg4[%c0_11] : memref<8xf32, #tpu.memory_space<smem>>
    %c0_12 = arith.constant 0 : index
    %22 = memref.load %arg5[%c0_12] : memref<8xf32, #tpu.memory_space<smem>>
    memref.store %12, %arg5[%c0_12] : memref<8xf32, #tpu.memory_space<smem>>
    %c0_13 = arith.constant 0 : index
    %23 = memref.load %arg6[%c0_13] : memref<8xf32, #tpu.memory_space<smem>>
    memref.store %15, %arg6[%c0_13] : memref<8xf32, #tpu.memory_space<smem>>
    %c0_14 = arith.constant 0 : index
    %24 = memref.load %arg7[%c0_14] : memref<8xf32, #tpu.memory_space<smem>>
    memref.store %19, %arg7[%c0_14] : memref<8xf32, #tpu.memory_space<smem>>
    %cst_15 = arith.constant 0.699999988 : f32
    %25 = arith.mulf %cst_15, %8 : f32
    %c1_16 = arith.constant 1 : index
    %26 = memref.load %arg0[%c1_16] : memref<8xf32, #tpu.memory_space<smem>>
    %27 = arith.mulf %0, %26 : f32
    %28 = arith.addf %25, %27 : f32
    %cst_17 = arith.constant 6.000000e-01 : f32
    %29 = arith.mulf %cst_17, %12 : f32
    %cst_18 = arith.constant 1.000000e+00 : f32
    %30 = arith.subf %cst_18, %19 : f32
    %31 = arith.mulf %29, %30 : f32
    %32 = arith.addf %31, %28 : f32
    %cst_19 = arith.constant 6.000000e-01 : f32
    %33 = arith.mulf %cst_19, %15 : f32
    %cst_20 = arith.constant 1.000000e-01 : f32
    %34 = arith.mulf %cst_20, %19 : f32
    %35 = arith.addf %33, %34 : f32
    %cst_21 = arith.constant 1.000000e+00 : f32
    %36 = arith.addf %cst_21, %35 : f32
    %37 = arith.subf %32, %36 : f32
    %cst_22 = arith.constant 0.000000e+00 : f32
    %38 = arith.cmpf ogt, %37, %cst_22 : f32
    %cst_23 = arith.constant 1.000000e+00 : f32
    %cst_24 = arith.constant 0.000000e+00 : f32
    %39 = arith.select %38, %cst_23, %cst_24 : f32
    %c1_25 = arith.constant 1 : index
    %40 = memref.load %arg3[%c1_25] : memref<8xf32, #tpu.memory_space<smem>>
    memref.store %39, %arg3[%c1_25] : memref<8xf32, #tpu.memory_space<smem>>
    %c1_26 = arith.constant 1 : index
    %41 = memref.load %arg4[%c1_26] : memref<8xf32, #tpu.memory_space<smem>>
    memref.store %28, %arg4[%c1_26] : memref<8xf32, #tpu.memory_space<smem>>
    %c1_27 = arith.constant 1 : index
    %42 = memref.load %arg5[%c1_27] : memref<8xf32, #tpu.memory_space<smem>>
    memref.store %32, %arg5[%c1_27] : memref<8xf32, #tpu.memory_space<smem>>
    %c1_28 = arith.constant 1 : index
    %43 = memref.load %arg6[%c1_28] : memref<8xf32, #tpu.memory_space<smem>>
    memref.store %35, %arg6[%c1_28] : memref<8xf32, #tpu.memory_space<smem>>
    %c1_29 = arith.constant 1 : index
    %44 = memref.load %arg7[%c1_29] : memref<8xf32, #tpu.memory_space<smem>>
    memref.store %39, %arg7[%c1_29] : memref<8xf32, #tpu.memory_space<smem>>
    %cst_30 = arith.constant 0.699999988 : f32
    %45 = arith.mulf %cst_30, %28 : f32
    %c2_31 = arith.constant 2 : index
    %46 = memref.load %arg0[%c2_31] : memref<8xf32, #tpu.memory_space<smem>>
    %47 = arith.mulf %0, %46 : f32
    %48 = arith.addf %45, %47 : f32
    %cst_32 = arith.constant 6.000000e-01 : f32
    %49 = arith.mulf %cst_32, %32 : f32
    %cst_33 = arith.constant 1.000000e+00 : f32
    %50 = arith.subf %cst_33, %39 : f32
    %51 = arith.mulf %49, %50 : f32
    %52 = arith.addf %51, %48 : f32
    %cst_34 = arith.constant 6.000000e-01 : f32
    %53 = arith.mulf %cst_34, %35 : f32
    %cst_35 = arith.constant 1.000000e-01 : f32
    %54 = arith.mulf %cst_35, %39 : f32
    %55 = arith.addf %53, %54 : f32
    %cst_36 = arith.constant 1.000000e+00 : f32
    %56 = arith.addf %cst_36, %55 : f32
    %57 = arith.subf %52, %56 : f32
    %cst_37 = arith.constant 0.000000e+00 : f32
    %58 = arith.cmpf ogt, %57, %cst_37 : f32
    %cst_38 = arith.constant 1.000000e+00 : f32
    %cst_39 = arith.constant 0.000000e+00 : f32
    %59 = arith.select %58, %cst_38, %cst_39 : f32
    %c2_40 = arith.constant 2 : index
    %60 = memref.load %arg3[%c2_40] : memref<8xf32, #tpu.memory_space<smem>>
    memref.store %59, %arg3[%c2_40] : memref<8xf32, #tpu.memory_space<smem>>
    %c2_41 = arith.constant 2 : index
    %61 = memref.load %arg4[%c2_41] : memref<8xf32, #tpu.memory_space<smem>>
    memref.store %48, %arg4[%c2_41] : memref<8xf32, #tpu.memory_space<smem>>
    %c2_42 = arith.constant 2 : index
    %62 = memref.load %arg5[%c2_42] : memref<8xf32, #tpu.memory_space<smem>>
    memref.store %52, %arg5[%c2_42] : memref<8xf32, #tpu.memory_space<smem>>
    %c2_43 = arith.constant 2 : index
    %63 = memref.load %arg6[%c2_43] : memref<8xf32, #tpu.memory_space<smem>>
    memref.store %55, %arg6[%c2_43] : memref<8xf32, #tpu.memory_space<smem>>
    %c2_44 = arith.constant 2 : index
    %64 = memref.load %arg7[%c2_44] : memref<8xf32, #tpu.memory_space<smem>>
    memref.store %59, %arg7[%c2_44] : memref<8xf32, #tpu.memory_space<smem>>
    %cst_45 = arith.constant 0.699999988 : f32
    %65 = arith.mulf %cst_45, %48 : f32
    %c3_46 = arith.constant 3 : index
    %66 = memref.load %arg0[%c3_46] : memref<8xf32, #tpu.memory_space<smem>>
    %67 = arith.mulf %0, %66 : f32
    %68 = arith.addf %65, %67 : f32
    %cst_47 = arith.constant 6.000000e-01 : f32
    %69 = arith.mulf %cst_47, %52 : f32
    %cst_48 = arith.constant 1.000000e+00 : f32
    %70 = arith.subf %cst_48, %59 : f32
    %71 = arith.mulf %69, %70 : f32
    %72 = arith.addf %71, %68 : f32
    %cst_49 = arith.constant 6.000000e-01 : f32
    %73 = arith.mulf %cst_49, %55 : f32
    %cst_50 = arith.constant 1.000000e-01 : f32
    %74 = arith.mulf %cst_50, %59 : f32
    %75 = arith.addf %73, %74 : f32
    %cst_51 = arith.constant 1.000000e+00 : f32
    %76 = arith.addf %cst_51, %75 : f32
    %77 = arith.subf %72, %76 : f32
    %cst_52 = arith.constant 0.000000e+00 : f32
    %78 = arith.cmpf ogt, %77, %cst_52 : f32
    %cst_53 = arith.constant 1.000000e+00 : f32
    %cst_54 = arith.constant 0.000000e+00 : f32
    %79 = arith.select %78, %cst_53, %cst_54 : f32
    %c3_55 = arith.constant 3 : index
    %80 = memref.load %arg3[%c3_55] : memref<8xf32, #tpu.memory_space<smem>>
    memref.store %79, %arg3[%c3_55] : memref<8xf32, #tpu.memory_space<smem>>
    %c3_56 = arith.constant 3 : index
    %81 = memref.load %arg4[%c3_56] : memref<8xf32, #tpu.memory_space<smem>>
    memref.store %68, %arg4[%c3_56] : memref<8xf32, #tpu.memory_space<smem>>
    %c3_57 = arith.constant 3 : index
    %82 = memref.load %arg5[%c3_57] : memref<8xf32, #tpu.memory_space<smem>>
    memref.store %72, %arg5[%c3_57] : memref<8xf32, #tpu.memory_space<smem>>
    %c3_58 = arith.constant 3 : index
    %83 = memref.load %arg6[%c3_58] : memref<8xf32, #tpu.memory_space<smem>>
    memref.store %75, %arg6[%c3_58] : memref<8xf32, #tpu.memory_space<smem>>
    %c3_59 = arith.constant 3 : index
    %84 = memref.load %arg7[%c3_59] : memref<8xf32, #tpu.memory_space<smem>>
    memref.store %79, %arg7[%c3_59] : memref<8xf32, #tpu.memory_space<smem>>
    %cst_60 = arith.constant 0.699999988 : f32
    %85 = arith.mulf %cst_60, %68 : f32
    %c4 = arith.constant 4 : index
    %86 = memref.load %arg0[%c4] : memref<8xf32, #tpu.memory_space<smem>>
    %87 = arith.mulf %0, %86 : f32
    %88 = arith.addf %85, %87 : f32
    %cst_61 = arith.constant 6.000000e-01 : f32
    %89 = arith.mulf %cst_61, %72 : f32
    %cst_62 = arith.constant 1.000000e+00 : f32
    %90 = arith.subf %cst_62, %79 : f32
    %91 = arith.mulf %89, %90 : f32
    %92 = arith.addf %91, %88 : f32
    %cst_63 = arith.constant 6.000000e-01 : f32
    %93 = arith.mulf %cst_63, %75 : f32
    %cst_64 = arith.constant 1.000000e-01 : f32
    %94 = arith.mulf %cst_64, %79 : f32
    %95 = arith.addf %93, %94 : f32
    %cst_65 = arith.constant 1.000000e+00 : f32
    %96 = arith.addf %cst_65, %95 : f32
    %97 = arith.subf %92, %96 : f32
    %cst_66 = arith.constant 0.000000e+00 : f32
    %98 = arith.cmpf ogt, %97, %cst_66 : f32
    %cst_67 = arith.constant 1.000000e+00 : f32
    %cst_68 = arith.constant 0.000000e+00 : f32
    %99 = arith.select %98, %cst_67, %cst_68 : f32
    %c4_69 = arith.constant 4 : index
    %100 = memref.load %arg3[%c4_69] : memref<8xf32, #tpu.memory_space<smem>>
    memref.store %99, %arg3[%c4_69] : memref<8xf32, #tpu.memory_space<smem>>
    %c4_70 = arith.constant 4 : index
    %101 = memref.load %arg4[%c4_70] : memref<8xf32, #tpu.memory_space<smem>>
    memref.store %88, %arg4[%c4_70] : memref<8xf32, #tpu.memory_space<smem>>
    %c4_71 = arith.constant 4 : index
    %102 = memref.load %arg5[%c4_71] : memref<8xf32, #tpu.memory_space<smem>>
    memref.store %92, %arg5[%c4_71] : memref<8xf32, #tpu.memory_space<smem>>
    %c4_72 = arith.constant 4 : index
    %103 = memref.load %arg6[%c4_72] : memref<8xf32, #tpu.memory_space<smem>>
    memref.store %95, %arg6[%c4_72] : memref<8xf32, #tpu.memory_space<smem>>
    %c4_73 = arith.constant 4 : index
    %104 = memref.load %arg7[%c4_73] : memref<8xf32, #tpu.memory_space<smem>>
    memref.store %99, %arg7[%c4_73] : memref<8xf32, #tpu.memory_space<smem>>
    %cst_74 = arith.constant 0.699999988 : f32
    %105 = arith.mulf %cst_74, %88 : f32
    %c5 = arith.constant 5 : index
    %106 = memref.load %arg0[%c5] : memref<8xf32, #tpu.memory_space<smem>>
    %107 = arith.mulf %0, %106 : f32
    %108 = arith.addf %105, %107 : f32
    %cst_75 = arith.constant 6.000000e-01 : f32
    %109 = arith.mulf %cst_75, %92 : f32
    %cst_76 = arith.constant 1.000000e+00 : f32
    %110 = arith.subf %cst_76, %99 : f32
    %111 = arith.mulf %109, %110 : f32
    %112 = arith.addf %111, %108 : f32
    %cst_77 = arith.constant 6.000000e-01 : f32
    %113 = arith.mulf %cst_77, %95 : f32
    %cst_78 = arith.constant 1.000000e-01 : f32
    %114 = arith.mulf %cst_78, %99 : f32
    %115 = arith.addf %113, %114 : f32
    %cst_79 = arith.constant 1.000000e+00 : f32
    %116 = arith.addf %cst_79, %115 : f32
    %117 = arith.subf %112, %116 : f32
    %cst_80 = arith.constant 0.000000e+00 : f32
    %118 = arith.cmpf ogt, %117, %cst_80 : f32
    %cst_81 = arith.constant 1.000000e+00 : f32
    %cst_82 = arith.constant 0.000000e+00 : f32
    %119 = arith.select %118, %cst_81, %cst_82 : f32
    %c5_83 = arith.constant 5 : index
    %120 = memref.load %arg3[%c5_83] : memref<8xf32, #tpu.memory_space<smem>>
    memref.store %119, %arg3[%c5_83] : memref<8xf32, #tpu.memory_space<smem>>
    %c5_84 = arith.constant 5 : index
    %121 = memref.load %arg4[%c5_84] : memref<8xf32, #tpu.memory_space<smem>>
    memref.store %108, %arg4[%c5_84] : memref<8xf32, #tpu.memory_space<smem>>
    %c5_85 = arith.constant 5 : index
    %122 = memref.load %arg5[%c5_85] : memref<8xf32, #tpu.memory_space<smem>>
    memref.store %112, %arg5[%c5_85] : memref<8xf32, #tpu.memory_space<smem>>
    %c5_86 = arith.constant 5 : index
    %123 = memref.load %arg6[%c5_86] : memref<8xf32, #tpu.memory_space<smem>>
    memref.store %115, %arg6[%c5_86] : memref<8xf32, #tpu.memory_space<smem>>
    %c5_87 = arith.constant 5 : index
    %124 = memref.load %arg7[%c5_87] : memref<8xf32, #tpu.memory_space<smem>>
    memref.store %119, %arg7[%c5_87] : memref<8xf32, #tpu.memory_space<smem>>
    %cst_88 = arith.constant 0.699999988 : f32
    %125 = arith.mulf %cst_88, %108 : f32
    %c6 = arith.constant 6 : index
    %126 = memref.load %arg0[%c6] : memref<8xf32, #tpu.memory_space<smem>>
    %127 = arith.mulf %0, %126 : f32
    %128 = arith.addf %125, %127 : f32
    %cst_89 = arith.constant 6.000000e-01 : f32
    %129 = arith.mulf %cst_89, %112 : f32
    %cst_90 = arith.constant 1.000000e+00 : f32
    %130 = arith.subf %cst_90, %119 : f32
    %131 = arith.mulf %129, %130 : f32
    %132 = arith.addf %131, %128 : f32
    %cst_91 = arith.constant 6.000000e-01 : f32
    %133 = arith.mulf %cst_91, %115 : f32
    %cst_92 = arith.constant 1.000000e-01 : f32
    %134 = arith.mulf %cst_92, %119 : f32
    %135 = arith.addf %133, %134 : f32
    %cst_93 = arith.constant 1.000000e+00 : f32
    %136 = arith.addf %cst_93, %135 : f32
    %137 = arith.subf %132, %136 : f32
    %cst_94 = arith.constant 0.000000e+00 : f32
    %138 = arith.cmpf ogt, %137, %cst_94 : f32
    %cst_95 = arith.constant 1.000000e+00 : f32
    %cst_96 = arith.constant 0.000000e+00 : f32
    %139 = arith.select %138, %cst_95, %cst_96 : f32
    %c6_97 = arith.constant 6 : index
    %140 = memref.load %arg3[%c6_97] : memref<8xf32, #tpu.memory_space<smem>>
    memref.store %139, %arg3[%c6_97] : memref<8xf32, #tpu.memory_space<smem>>
    %c6_98 = arith.constant 6 : index
    %141 = memref.load %arg4[%c6_98] : memref<8xf32, #tpu.memory_space<smem>>
    memref.store %128, %arg4[%c6_98] : memref<8xf32, #tpu.memory_space<smem>>
    %c6_99 = arith.constant 6 : index
    %142 = memref.load %arg5[%c6_99] : memref<8xf32, #tpu.memory_space<smem>>
    memref.store %132, %arg5[%c6_99] : memref<8xf32, #tpu.memory_space<smem>>
    %c6_100 = arith.constant 6 : index
    %143 = memref.load %arg6[%c6_100] : memref<8xf32, #tpu.memory_space<smem>>
    memref.store %135, %arg6[%c6_100] : memref<8xf32, #tpu.memory_space<smem>>
    %c6_101 = arith.constant 6 : index
    %144 = memref.load %arg7[%c6_101] : memref<8xf32, #tpu.memory_space<smem>>
    memref.store %139, %arg7[%c6_101] : memref<8xf32, #tpu.memory_space<smem>>
    %cst_102 = arith.constant 0.699999988 : f32
    %145 = arith.mulf %cst_102, %128 : f32
    %c7 = arith.constant 7 : index
    %146 = memref.load %arg0[%c7] : memref<8xf32, #tpu.memory_space<smem>>
    %147 = arith.mulf %0, %146 : f32
    %148 = arith.addf %145, %147 : f32
    %cst_103 = arith.constant 6.000000e-01 : f32
    %149 = arith.mulf %cst_103, %132 : f32
    %cst_104 = arith.constant 1.000000e+00 : f32
    %150 = arith.subf %cst_104, %139 : f32
    %151 = arith.mulf %149, %150 : f32
    %152 = arith.addf %151, %148 : f32
    %cst_105 = arith.constant 6.000000e-01 : f32
    %153 = arith.mulf %cst_105, %135 : f32
    %cst_106 = arith.constant 1.000000e-01 : f32
    %154 = arith.mulf %cst_106, %139 : f32
    %155 = arith.addf %153, %154 : f32
    %cst_107 = arith.constant 1.000000e+00 : f32
    %156 = arith.addf %cst_107, %155 : f32
    %157 = arith.subf %152, %156 : f32
    %cst_108 = arith.constant 0.000000e+00 : f32
    %158 = arith.cmpf ogt, %157, %cst_108 : f32
    %cst_109 = arith.constant 1.000000e+00 : f32
    %cst_110 = arith.constant 0.000000e+00 : f32
    %159 = arith.select %158, %cst_109, %cst_110 : f32
    %c7_111 = arith.constant 7 : index
    %160 = memref.load %arg3[%c7_111] : memref<8xf32, #tpu.memory_space<smem>>
    memref.store %159, %arg3[%c7_111] : memref<8xf32, #tpu.memory_space<smem>>
    %c7_112 = arith.constant 7 : index
    %161 = memref.load %arg4[%c7_112] : memref<8xf32, #tpu.memory_space<smem>>
    memref.store %148, %arg4[%c7_112] : memref<8xf32, #tpu.memory_space<smem>>
    %c7_113 = arith.constant 7 : index
    %162 = memref.load %arg5[%c7_113] : memref<8xf32, #tpu.memory_space<smem>>
    memref.store %152, %arg5[%c7_113] : memref<8xf32, #tpu.memory_space<smem>>
    %c7_114 = arith.constant 7 : index
    %163 = memref.load %arg6[%c7_114] : memref<8xf32, #tpu.memory_space<smem>>
    memref.store %155, %arg6[%c7_114] : memref<8xf32, #tpu.memory_space<smem>>
    %c7_115 = arith.constant 7 : index
    %164 = memref.load %arg7[%c7_115] : memref<8xf32, #tpu.memory_space<smem>>
    memref.store %159, %arg7[%c7_115] : memref<8xf32, #tpu.memory_space<smem>>
    return
  }
}

</mosaic_0001>

<llo_original>
// kernel: tpu_custom_call.1
$region0: #{tpu_custom_call.1}
  #allocation0 [shape = 'u32[]', space=smem, size = 0x4, offset = 0x4, fixed_abs, tag = 'smem constant byte address 0x4 - core index']
  #allocation1 [shape = 'u32[144,128]{1,0:T(1,128)}', space=vmem, size = 0x12000, scoped, tag = 'internal scratch']
  #allocation2 [shape = 'f32[1]{0:T(128)S(6)}', space=smem, size = 0x200, scoped, tag = 'scoped memory for tpu_custom_call.1']
  %s0 = inlined_call_operand.vmem [shape: f32[8], index: 0, kind: input, shape index: {}]
  %s1 = inlined_call_operand.<no memory space> [shape: f32[1], index: 1, kind: input, shape index: {}]
  %s2 = inlined_call_operand.vmem [shape: f32[4], index: 2, kind: input, shape index: {}]
  %s3 = inlined_call_operand.hbm [shape: f32[8], index: 3, kind: output, shape index: {0}]
  %s4 = inlined_call_operand.hbm [shape: f32[8], index: 4, kind: output, shape index: {1}]
  %s5 = inlined_call_operand.hbm [shape: f32[8], index: 5, kind: output, shape index: {2}]
  %s6 = inlined_call_operand.hbm [shape: f32[8], index: 6, kind: output, shape index: {3}]
  %s7 = inlined_call_operand.hbm [shape: f32[8], index: 7, kind: output, shape index: {4}]
  %8 = xla_tuple %s3, %s4, %s5, %s6, %s7
  %s9 = sld [smem:[#allocation0]]
  $region62: #{tpu_custom_call.1} parent=0
    _
  %s11 = ssub.s32 1, %s9
  %s12 = scalar_select 0, %s11, %s9
  %13 = sst [smem:[#allocation2]] %s1
  $region1: #{tpu_custom_call.1} parent=0
    #allocation3 [shape = 'u8[512]{0}', space=smem, size = 0x200, scoped, tag = 'input window, operand 0, single buffered']
    #allocation4 [shape = 's32[1]{0}', space=sflag, size = 0x4, scoped, tag = 'scoped memory for tpu_custom_call.1']
    #allocation5 [shape = 's32[1]{0}', space=sflag, size = 0x4, scoped, tag = 'scoped memory for tpu_custom_call.1']
    #allocation6 [shape = 'u8[512]{0}', space=smem, size = 0x200, scoped, tag = 'input window, operand 2, single buffered']
    #allocation7 [shape = 's32[1]{0}', space=sflag, size = 0x4, scoped, tag = 'scoped memory for tpu_custom_call.1']
    #allocation8 [shape = 'u8[512]{0}', space=smem, size = 0x200, scoped, tag = 'output window, operand 0, single buffered']
    #allocation9 [shape = 'u8[512]{0}', space=smem, size = 0x200, scoped, tag = 'output window, operand 1, single buffered']
    #allocation10 [shape = 's32[1]{0}', space=sflag, size = 0x4, scoped, tag = 'scoped memory for tpu_custom_call.1']
    #allocation11 [shape = 'u8[512]{0}', space=smem, size = 0x200, scoped, tag = 'output window, operand 2, single buffered']
    #allocation12 [shape = 'u8[512]{0}', space=smem, size = 0x200, scoped, tag = 'output window, operand 3, single buffered']
    #allocation13 [shape = 's32[1]{0}', space=sflag, size = 0x4, scoped, tag = 'scoped memory for tpu_custom_call.1']
    #allocation14 [shape = 'u8[512]{0}', space=smem, size = 0x200, scoped, tag = 'output window, operand 4, single buffered']
    %14 = vsyncpa [#allocation5], 0
    %15 = vsyncpa [#allocation7], 0
    %16 = vsyncpa [#allocation4], 0
    %17 = vsyncpa [#allocation10], 0
    %18 = vsyncpa [#allocation13], 0
    // Predicated region
    $region2: #{tpu_custom_call.1} parent=1 // pred_check
      _
    $region3: #{tpu_custom_call.1} parent=1 // pred_check_branch
      %20 = sbr.rel (0) target = $region5
    $region4: #{tpu_custom_call.1} parent=1 // pred_region
      %s22 = ssub.s32 16, 16
      %23 = vsyncadd [#allocation5], %s22
      %s25 = sshll.u32 %s0, 4
      %s26 = int_to_ptr.vmem [resolvable:$true] %s25
      %28 = dma.vmem_to_smem %s26, 16, [#allocation3], [#allocation5]
    $region5: #{tpu_custom_call.1} parent=1 // pred_fallthru
      _
    // Predicated region
    $region6: #{tpu_custom_call.1} parent=1 // pred_check
      _
    $region7: #{tpu_custom_call.1} parent=1 // pred_check_branch
      %30 = sbr.rel (0) target = $region9
    $region8: #{tpu_custom_call.1} parent=1 // pred_region
      _
    $region9: #{tpu_custom_call.1} parent=1 // pred_fallthru
      _
    // Predicated region
    $region10: #{tpu_custom_call.1} parent=1 // pred_check
      _
    $region11: #{tpu_custom_call.1} parent=1 // pred_check_branch
      %32 = sbr.rel (0) target = $region13
    $region12: #{tpu_custom_call.1} parent=1 // pred_region
      %s34 = ssub.s32 16, 16
      %35 = vsyncadd [#allocation7], %s34
      %s37 = sshll.u32 %s2, 4
      %s38 = int_to_ptr.vmem [resolvable:$true] %s37
      %40 = dma.vmem_to_smem %s38, 16, [#allocation6], [#allocation7]
    $region13: #{tpu_custom_call.1} parent=1 // pred_fallthru
      _
    // Predicated region
    $region14: #{tpu_custom_call.1} parent=1 // pred_check
      _
    $region15: #{tpu_custom_call.1} parent=1 // pred_check_branch
      %42 = sbr.rel (0) target = $region17
    $region16: #{tpu_custom_call.1} parent=1 // pred_region
      %43 = dma.done [#allocation5], 16
    $region17: #{tpu_custom_call.1} parent=1 // pred_fallthru
      _
    // Predicated region
    $region18: #{tpu_custom_call.1} parent=1 // pred_check
      _
    $region19: #{tpu_custom_call.1} parent=1 // pred_check_branch
      %45 = sbr.rel (0) target = $region21
    $region20: #{tpu_custom_call.1} parent=1 // pred_region
      %46 = dma.done [#allocation7], 16
    $region21: #{tpu_custom_call.1} parent=1 // pred_fallthru
      _
    %47 = sfence
    %s48 = sld [smem:[#allocation2]]
    %s49 = sld [smem:[#allocation6]]
    %s50 = sld [smem:[#allocation6 + $0x1]]
    %s51 = sld [smem:[#allocation6 + $0x2]]
    %s52 = sld [smem:[#allocation6 + $0x3]]
    %s53 = smul.f32 %s49, 0.7
    %s54 = sld [smem:[#allocation3]]
    %s55 = smul.f32 %s48, %s54
    %s56 = sadd.f32 %s53, %s55
    %s57 = smul.f32 %s50, 0.6
    %s58 = ssub.f32 1.0, %s52
    %s59 = smul.f32 %s57, %s58
    %s60 = sadd.f32 %s59, %s56
    %s61 = smul.f32 %s51, 0.6
    %s62 = smul.f32 %s52, 0.1
    %s63 = sadd.f32 %s61, %s62
    %s64 = sadd.f32 %s63, 1.0
    %s65 = ssub.f32 %s60, %s64
    %p66 = scmp.gt.f32.partialorder %s65, 0.0
    %s67 = scalar_select %p66, 1.0, 0.0
    %s68 = scalar_lea.smem [#allocation8], 0
    %69 = sst [smem:[%s68]] %s67
    %s70 = scalar_lea.smem [#allocation9], 0
    %71 = sst [smem:[%s70]] %s56
    %s72 = scalar_lea.smem [#allocation11], 0
    %73 = sst [smem:[%s72]] %s60
    %s74 = scalar_lea.smem [#allocation12], 0
    %75 = sst [smem:[%s74]] %s63
    %s76 = scalar_lea.smem [#allocation14], 0
    %77 = sst [smem:[%s76]] %s67
    %s78 = smul.f32 %s56, 0.7
    %s79 = sld [smem:[#allocation3 + $0x1]]
    %s80 = smul.f32 %s48, %s79
    %s81 = sadd.f32 %s78, %s80
    %s82 = smul.f32 %s60, 0.6
    %s83 = ssub.f32 1.0, %s67
    %s84 = smul.f32 %s82, %s83
    %s85 = sadd.f32 %s84, %s81
    %s86 = smul.f32 %s63, 0.6
    %s87 = smul.f32 %s67, 0.1
    %s88 = sadd.f32 %s86, %s87
    %s89 = sadd.f32 %s88, 1.0
    %s90 = ssub.f32 %s85, %s89
    %p91 = scmp.gt.f32.partialorder %s90, 0.0
    %s92 = scalar_select %p91, 1.0, 0.0
    %s93 = scalar_lea.smem [#allocation8], 1
    %94 = sst [smem:[%s93]] %s92
    %s95 = scalar_lea.smem [#allocation9], 1
    %96 = sst [smem:[%s95]] %s81
    %s97 = scalar_lea.smem [#allocation11], 1
    %98 = sst [smem:[%s97]] %s85
    %s99 = scalar_lea.smem [#allocation12], 1
    %100 = sst [smem:[%s99]] %s88
    %s101 = scalar_lea.smem [#allocation14], 1
    %102 = sst [smem:[%s101]] %s92
    %s103 = smul.f32 %s81, 0.7
    %s104 = sld [smem:[#allocation3 + $0x2]]
    %s105 = smul.f32 %s48, %s104
    %s106 = sadd.f32 %s103, %s105
    %s107 = smul.f32 %s85, 0.6
    %s108 = ssub.f32 1.0, %s92
    %s109 = smul.f32 %s107, %s108
    %s110 = sadd.f32 %s109, %s106
    %s111 = smul.f32 %s88, 0.6
    %s112 = smul.f32 %s92, 0.1
    %s113 = sadd.f32 %s111, %s112
    %s114 = sadd.f32 %s113, 1.0
    %s115 = ssub.f32 %s110, %s114
    %p116 = scmp.gt.f32.partialorder %s115, 0.0
    %s117 = scalar_select %p116, 1.0, 0.0
    %s118 = scalar_lea.smem [#allocation8], 2
    %119 = sst [smem:[%s118]] %s117
    %s120 = scalar_lea.smem [#allocation9], 2
    %121 = sst [smem:[%s120]] %s106
    %s122 = scalar_lea.smem [#allocation11], 2
    %123 = sst [smem:[%s122]] %s110
    %s124 = scalar_lea.smem [#allocation12], 2
    %125 = sst [smem:[%s124]] %s113
    %s126 = scalar_lea.smem [#allocation14], 2
    %127 = sst [smem:[%s126]] %s117
    %s128 = smul.f32 %s106, 0.7
    %s129 = sld [smem:[#allocation3 + $0x3]]
    %s130 = smul.f32 %s48, %s129
    %s131 = sadd.f32 %s128, %s130
    %s132 = smul.f32 %s110, 0.6
    %s133 = ssub.f32 1.0, %s117
    %s134 = smul.f32 %s132, %s133
    %s135 = sadd.f32 %s134, %s131
    %s136 = smul.f32 %s113, 0.6
    %s137 = smul.f32 %s117, 0.1
    %s138 = sadd.f32 %s136, %s137
    %s139 = sadd.f32 %s138, 1.0
    %s140 = ssub.f32 %s135, %s139
    %p141 = scmp.gt.f32.partialorder %s140, 0.0
    %s142 = scalar_select %p141, 1.0, 0.0
    %s143 = scalar_lea.smem [#allocation8], 3
    %144 = sst [smem:[%s143]] %s142
    %s145 = scalar_lea.smem [#allocation9], 3
    %146 = sst [smem:[%s145]] %s131
    %s147 = scalar_lea.smem [#allocation11], 3
    %148 = sst [smem:[%s147]] %s135
    %s149 = scalar_lea.smem [#allocation12], 3
    %150 = sst [smem:[%s149]] %s138
    %s151 = scalar_lea.smem [#allocation14], 3
    %152 = sst [smem:[%s151]] %s142
    %s153 = smul.f32 %s131, 0.7
    %s154 = sld [smem:[#allocation3 + $0x4]]
    %s155 = smul.f32 %s48, %s154
    %s156 = sadd.f32 %s153, %s155
    %s157 = smul.f32 %s135, 0.6
    %s158 = ssub.f32 1.0, %s142
    %s159 = smul.f32 %s157, %s158
    %s160 = sadd.f32 %s159, %s156
    %s161 = smul.f32 %s138, 0.6
    %s162 = smul.f32 %s142, 0.1
    %s163 = sadd.f32 %s161, %s162
    %s164 = sadd.f32 %s163, 1.0
    %s165 = ssub.f32 %s160, %s164
    %p166 = scmp.gt.f32.partialorder %s165, 0.0
    %s167 = scalar_select %p166, 1.0, 0.0
    %s168 = scalar_lea.smem [#allocation8], 4
    %169 = sst [smem:[%s168]] %s167
    %s170 = scalar_lea.smem [#allocation9], 4
    %171 = sst [smem:[%s170]] %s156
    %s172 = scalar_lea.smem [#allocation11], 4
    %173 = sst [smem:[%s172]] %s160
    %s174 = scalar_lea.smem [#allocation12], 4
    %175 = sst [smem:[%s174]] %s163
    %s176 = scalar_lea.smem [#allocation14], 4
    %177 = sst [smem:[%s176]] %s167
    %s178 = smul.f32 %s156, 0.7
    %s179 = sld [smem:[#allocation3 + $0x5]]
    %s180 = smul.f32 %s48, %s179
    %s181 = sadd.f32 %s178, %s180
    %s182 = smul.f32 %s160, 0.6
    %s183 = ssub.f32 1.0, %s167
    %s184 = smul.f32 %s182, %s183
    %s185 = sadd.f32 %s184, %s181
    %s186 = smul.f32 %s163, 0.6
    %s187 = smul.f32 %s167, 0.1
    %s188 = sadd.f32 %s186, %s187
    %s189 = sadd.f32 %s188, 1.0
    %s190 = ssub.f32 %s185, %s189
    %p191 = scmp.gt.f32.partialorder %s190, 0.0
    %s192 = scalar_select %p191, 1.0, 0.0
    %s193 = scalar_lea.smem [#allocation8], 5
    %194 = sst [smem:[%s193]] %s192
    %s195 = scalar_lea.smem [#allocation9], 5
    %196 = sst [smem:[%s195]] %s181
    %s197 = scalar_lea.smem [#allocation11], 5
    %198 = sst [smem:[%s197]] %s185
    %s199 = scalar_lea.smem [#allocation12], 5
    %200 = sst [smem:[%s199]] %s188
    %s201 = scalar_lea.smem [#allocation14], 5
    %202 = sst [smem:[%s201]] %s192
    %s203 = smul.f32 %s181, 0.7
    %s204 = sld [smem:[#allocation3 + $0x6]]
    %s205 = smul.f32 %s48, %s204
    %s206 = sadd.f32 %s203, %s205
    %s207 = smul.f32 %s185, 0.6
    %s208 = ssub.f32 1.0, %s192
    %s209 = smul.f32 %s207, %s208
    %s210 = sadd.f32 %s209, %s206
    %s211 = smul.f32 %s188, 0.6
    %s212 = smul.f32 %s192, 0.1
    %s213 = sadd.f32 %s211, %s212
    %s214 = sadd.f32 %s213, 1.0
    %s215 = ssub.f32 %s210, %s214
    %p216 = scmp.gt.f32.partialorder %s215, 0.0
    %s217 = scalar_select %p216, 1.0, 0.0
    %s218 = scalar_lea.smem [#allocation8], 6
    %219 = sst [smem:[%s218]] %s217
    %s220 = scalar_lea.smem [#allocation9], 6
    %221 = sst [smem:[%s220]] %s206
    %s222 = scalar_lea.smem [#allocation11], 6
    %223 = sst [smem:[%s222]] %s210
    %s224 = scalar_lea.smem [#allocation12], 6
    %225 = sst [smem:[%s224]] %s213
    %s226 = scalar_lea.smem [#allocation14], 6
    %227 = sst [smem:[%s226]] %s217
    %s228 = smul.f32 %s206, 0.7
    %s229 = sld [smem:[#allocation3 + $0x7]]
    %s230 = smul.f32 %s48, %s229
    %s231 = sadd.f32 %s228, %s230
    %s232 = smul.f32 %s210, 0.6
    %s233 = ssub.f32 1.0, %s217
    %s234 = smul.f32 %s232, %s233
    %s235 = sadd.f32 %s234, %s231
    %s236 = smul.f32 %s213, 0.6
    %s237 = smul.f32 %s217, 0.1
    %s238 = sadd.f32 %s236, %s237
    %s239 = sadd.f32 %s238, 1.0
    %s240 = ssub.f32 %s235, %s239
    %p241 = scmp.gt.f32.partialorder %s240, 0.0
    %s242 = scalar_select %p241, 1.0, 0.0
    %s243 = scalar_lea.smem [#allocation8], 7
    %244 = sst [smem:[%s243]] %s242
    %s245 = scalar_lea.smem [#allocation9], 7
    %246 = sst [smem:[%s245]] %s231
    %s247 = scalar_lea.smem [#allocation11], 7
    %248 = sst [smem:[%s247]] %s235
    %s249 = scalar_lea.smem [#allocation12], 7
    %250 = sst [smem:[%s249]] %s238
    %s251 = scalar_lea.smem [#allocation14], 7
    %252 = sst [smem:[%s251]] %s242
    // Predicated region
    $region22: #{tpu_custom_call.1} parent=1 // pred_check
      _
    $region23: #{tpu_custom_call.1} parent=1 // pred_check_branch
      %254 = sbr.rel (0) target = $region25
    $region24: #{tpu_custom_call.1} parent=1 // pred_region
      %s256 = ssub.s32 16, 16
      %257 = vsyncadd [#allocation4], %s256
      %260 = dma.smem_to_hbm [#allocation8], 16, %s3, [#allocation4]
    $region25: #{tpu_custom_call.1} parent=1 // pred_fallthru
      _
    // Predicated region
    $region26: #{tpu_custom_call.1} parent=1 // pred_check
      _
    $region27: #{tpu_custom_call.1} parent=1 // pred_check_branch
      %262 = sbr.rel (0) target = $region29
    $region28: #{tpu_custom_call.1} parent=1 // pred_region
      %s264 = ssub.s32 16, 16
      %265 = vsyncadd [#allocation10], %s264
      %268 = dma.smem_to_hbm [#allocation9], 16, %s4, [#allocation10]
    $region29: #{tpu_custom_call.1} parent=1 // pred_fallthru
      _
    // Predicated region
    $region30: #{tpu_custom_call.1} parent=1 // pred_check
      _
    $region31: #{tpu_custom_call.1} parent=1 // pred_check_branch
      %270 = sbr.rel (0) target = $region33
    $region32: #{tpu_custom_call.1} parent=1 // pred_region
      %s272 = ssub.s32 16, 16
      %273 = vsyncadd [#allocation10], %s272
      %276 = dma.smem_to_hbm [#allocation11], 16, %s5, [#allocation10]
    $region33: #{tpu_custom_call.1} parent=1 // pred_fallthru
      _
    // Predicated region
    $region34: #{tpu_custom_call.1} parent=1 // pred_check
      _
    $region35: #{tpu_custom_call.1} parent=1 // pred_check_branch
      %278 = sbr.rel (0) target = $region37
    $region36: #{tpu_custom_call.1} parent=1 // pred_region
      %s280 = ssub.s32 16, 16
      %281 = vsyncadd [#allocation13], %s280
      %284 = dma.smem_to_hbm [#allocation12], 16, %s6, [#allocation13]
    $region37: #{tpu_custom_call.1} parent=1 // pred_fallthru
      _
    // Predicated region
    $region38: #{tpu_custom_call.1} parent=1 // pred_check
      _
    $region39: #{tpu_custom_call.1} parent=1 // pred_check_branch
      %286 = sbr.rel (0) target = $region41
    $region40: #{tpu_custom_call.1} parent=1 // pred_region
      %s288 = ssub.s32 16, 16
      %289 = vsyncadd [#allocation13], %s288
      %292 = dma.smem_to_hbm [#allocation14], 16, %s7, [#allocation13]
    $region41: #{tpu_custom_call.1} parent=1 // pred_fallthru
      _
    // Predicated region
    $region42: #{tpu_custom_call.1} parent=1 // pred_check
      _
    $region43: #{tpu_custom_call.1} parent=1 // pred_check_branch
      %294 = sbr.rel (0) target = $region45
    $region44: #{tpu_custom_call.1} parent=1 // pred_region
      %295 = dma.done [#allocation4], 16
    $region45: #{tpu_custom_call.1} parent=1 // pred_fallthru
      _
    // Predicated region
    $region46: #{tpu_custom_call.1} parent=1 // pred_check
      _
    $region47: #{tpu_custom_call.1} parent=1 // pred_check_branch
      %297 = sbr.rel (0) target = $region49
    $region48: #{tpu_custom_call.1} parent=1 // pred_region
      %298 = dma.done [#allocation10], 16
    $region49: #{tpu_custom_call.1} parent=1 // pred_fallthru
      _
    // Predicated region
    $region50: #{tpu_custom_call.1} parent=1 // pred_check
      _
    $region51: #{tpu_custom_call.1} parent=1 // pred_check_branch
      %300 = sbr.rel (0) target = $region53
    $region52: #{tpu_custom_call.1} parent=1 // pred_region
      %301 = dma.done [#allocation10], 16
    $region53: #{tpu_custom_call.1} parent=1 // pred_fallthru
      _
    // Predicated region
    $region54: #{tpu_custom_call.1} parent=1 // pred_check
      _
    $region55: #{tpu_custom_call.1} parent=1 // pred_check_branch
      %303 = sbr.rel (0) target = $region57
    $region56: #{tpu_custom_call.1} parent=1 // pred_region
      %304 = dma.done [#allocation13], 16
    $region57: #{tpu_custom_call.1} parent=1 // pred_fallthru
      _
    // Predicated region
    $region58: #{tpu_custom_call.1} parent=1 // pred_check
      _
    $region59: #{tpu_custom_call.1} parent=1 // pred_check_branch
      %306 = sbr.rel (0) target = $region61
    $region60: #{tpu_custom_call.1} parent=1 // pred_region
      %307 = dma.done [#allocation13], 16
    $region61: #{tpu_custom_call.1} parent=1 // pred_fallthru
      _
    %308 = sfence
    %309 = vsyncpa [#allocation4], 1
    %310 = vsyncpa [#allocation10], 1
    %311 = vsyncpa [#allocation13], 1
    %312 = vsyncpa [#allocation5], 1
    %313 = vsyncpa [#allocation7], 1

</llo_original>
